<compile_context>
chip_gen: v7x
topology: tpu7x:2x2x1
jax: 0.10.0
libtpu: 0.0.40
codegen_flags: <defaults>
</compile_context>

<pallas_src>
import functools

import jax
import jax.numpy as jnp
from jax.experimental import pallas as pl
from jax.experimental.pallas import tpu as pltpu

LANE = 128      # vreg lane width
SUBLANE = 8     # f32 vreg sublane count
NCORES = 2      # max TensorCores per chip (v7x); no-op on 1-TC chips


def _round_up(n, m):
    return (n + m - 1) // m * m


def _mse_kernel(x_ref, y_ref, o_ref, acc_ref, *, block_rows, blocks_per_core,
                valid_rows, mask_tail):
    """Accumulate per-lane sums of (x - y)^2; emit one lane-vector per core."""
    c = pl.program_id(0)   # core-split axis ("parallel")
    i = pl.program_id(1)   # row-tile axis ("arbitrary", reduction)

    @pl.when(i == 0)
    def _():
        acc_ref[...] = jnp.zeros_like(acc_ref)

    d = x_ref[...].astype(jnp.float32) - y_ref[...].astype(jnp.float32)
    sq = d * d

    if mask_tail:
        # Rows past the logical end (partial last tile, or the clamped
        # duplicate tile of an odd core split) hold garbage in the pipeline
        # buffer; zero their contribution before accumulating.
        row0 = (c * blocks_per_core + i) * block_rows
        row_ids = row0 + jax.lax.broadcasted_iota(
            jnp.int32, (block_rows, LANE), 0)
        sq = jnp.where(row_ids < valid_rows, sq, 0.0)

    # Fold the row tile into the (8, 128) vreg-shaped partial: pure vector
    # adds, no per-step cross-lane reduction.
    acc_ref[...] += jnp.sum(
        sq.reshape(block_rows // SUBLANE, SUBLANE, LANE), axis=0)

    @pl.when(i == pl.num_programs(1) - 1)
    def _():
        # Collapse sublanes once per core; keep lanes dense in the output.
        o_ref[...] = jnp.sum(acc_ref[...], axis=0, keepdims=True)[None, :, :]


def mse_loss_pallas(x, gx, *, row_tile=1024):
    """MSE with mean reduction, computed in a Pallas TPU kernel.

    x, gx: arrays of identical shape (any rank; f32/bf16/...).  Returns an f32
    scalar.  row_tile = rows (of 128 lanes) streamed per grid step; the
    default 1024 keeps the double-buffered working set at 2 MiB (safe on
    v5e's 16 MiB scoped VMEM and v7x's smaller physical VMEM) while running
    near the HBM roofline.  Keep row_tile <= 4096 unless you also raise
    vmem_limit_bytes.
    """
    assert x.shape == gx.shape, "MSELoss requires matching shapes"
    total = int(x.size)

    # Flatten WITHOUT a dtype cast: the kernel casts to f32 in-VMEM, so bf16
    # inputs are read from HBM at half the bytes.
    xf = jnp.ravel(x)
    gf = jnp.ravel(gx)

    # View as a (rows, 128) slab with rows a multiple of 8.  Common case
    # (size % 1024 == 0) is a free reshape; a ragged tail is zero-padded
    # (padded positions contribute 0 to the sum and we divide by the true
    # element count).
    # TODO(synk): the ragged-tail pad still copies both inputs once; an
    # element-level in-kernel mask over 1-D blocks would remove it.
    slab = _round_up(max(total, 1), LANE * SUBLANE)
    if slab != total:
        xf = jnp.pad(xf, (0, slab - total))
        gf = jnp.pad(gf, (0, slab - total))
    rows = slab // LANE                      # multiple of SUBLANE
    x2 = xf.reshape(rows, LANE)
    g2 = gf.reshape(rows, LANE)

    # Tile: big blocks for the roofline; a tiny input collapses to one block.
    tile = min(_round_up(max(int(row_tile), SUBLANE), SUBLANE), rows)
    n_blocks = (rows + tile - 1) // tile
    ncores = min(NCORES, n_blocks)           # v7x: shard tiles across 2 TCs
    blocks_per_core = (n_blocks + ncores - 1) // ncores
    mask_tail = (ncores * blocks_per_core * tile) != rows

    if ncores * blocks_per_core == n_blocks:
        def row_block(c, i):
            return (c * blocks_per_core + i, 0)
    else:
        # Odd split: clamp the overflow iteration of the last core onto a
        # valid block; its rows are >= `rows`, so the in-kernel mask zeroes it.
        def row_block(c, i):
            return (jnp.minimum(c * blocks_per_core + i, n_blocks - 1), 0)

    kernel = functools.partial(
        _mse_kernel, block_rows=tile, blocks_per_core=blocks_per_core,
        valid_rows=rows, mask_tail=mask_tail)

    partials = pl.pallas_call(
        kernel,
        out_shape=jax.ShapeDtypeStruct((ncores, 1, LANE), jnp.float32),
        grid_spec=pltpu.PrefetchScalarGridSpec(
            num_scalar_prefetch=0,
            grid=(ncores, blocks_per_core),
            in_specs=[
                pl.BlockSpec((tile, LANE), row_block),
                pl.BlockSpec((tile, LANE), row_block),
            ],
            out_specs=pl.BlockSpec((1, 1, LANE), lambda c, i: (c, 0, 0)),
            scratch_shapes=[pltpu.VMEM((SUBLANE, LANE), jnp.float32)],
        ),
        compiler_params=pltpu.CompilerParams(
            dimension_semantics=("parallel", "arbitrary"),
        ),
    )(x2, g2)

    # Final lane/core collapse + mean normalization (tiny, done in XLA).
    return jnp.sum(partials) / jnp.float32(total)


if __name__ == "__main__":
    key = jax.random.PRNGKey(0)
    k1, k2 = jax.random.split(key)

    # Small shapes consistent with a generic loss over feature maps (NCHW).
    x_inputs = jax.random.normal(k1, (2, 4, 16, 16), dtype=jnp.float32)
    gx_outputs = jax.random.normal(k2, (2, 4, 16, 16), dtype=jnp.float32)

    loss = mse_loss_pallas(x_inputs, gx_outputs)
    jax.block_until_ready(loss)
    ref = jnp.mean((x_inputs - gx_outputs) ** 2)
    assert jnp.allclose(loss, ref, rtol=1e-6, atol=1e-6), (loss, ref)

    # Secondary check: ragged size + multi-tile + core-split + tail-mask path.
    k3, k4 = jax.random.split(k2)
    xr = jax.random.normal(k3, (2, 5, 13, 17), dtype=jnp.float32)  # 2210 elems
    gr = jax.random.normal(k4, (2, 5, 13, 17), dtype=jnp.float32)
    loss_r = mse_loss_pallas(xr, gr, row_tile=8)
    jax.block_until_ready(loss_r)
    ref_r = jnp.mean((xr - gr) ** 2)
    assert jnp.allclose(loss_r, ref_r, rtol=1e-5, atol=1e-6), (loss_r, ref_r)

    print("KERNEL_OK")
</pallas_src>

<mosaic_0001>
module attributes {stable_mosaic.version = 11 : i64} {
  func.func @_mse_kernel(%arg0: i32, %arg1: i32, %arg2: memref<16x128xf32, #tpu.memory_space<vmem>>, %arg3: memref<16x128xf32, #tpu.memory_space<vmem>>, %arg4: memref<1x1x128xf32, #tpu.memory_space<vmem>>, %arg5: memref<8x128xf32, #tpu.memory_space<vmem>>) attributes {dimension_semantics = [#tpu.dimension_semantics<parallel>, #tpu.dimension_semantics<arbitrary>], iteration_bounds = array<i64: 1, 1>, scalar_prefetch = 0 : i64, scratch_operands = 1 : i64, tpu.core_type = #tpu.core_type<tc>, window_params = [{transform_indices = @transform_0, window_bounds = array<i64: 16, 128>}, {transform_indices = @transform_1, window_bounds = array<i64: 16, 128>}, {transform_indices = @transform_2, window_bounds = array<i64: 1, 1, 128>}]} {
    %c0_i32 = arith.constant 0 : i32
    %0 = arith.cmpi eq, %arg1, %c0_i32 : i32
    %1 = arith.extui %0 : i1 to i32
    %c0_i32_0 = arith.constant 0 : i32
    %2 = arith.cmpi ne, %1, %c0_i32_0 : i32
    scf.if %2 {
      %cst_10 = arith.constant 0.000000e+00 : f32
      %15 = vector.broadcast %cst_10 : f32 to vector<8x128xf32>
      %c0_11 = arith.constant 0 : index
      %c0_12 = arith.constant 0 : index
      %16 = vector.load %arg5[%c0_11, %c0_12] : memref<8x128xf32, #tpu.memory_space<vmem>>, vector<8x128xf32>
      tpu.vector_store %arg5[%c0_11, %c0_12], %15 {strides = array<i32>} : memref<8x128xf32, #tpu.memory_space<vmem>>, vector<8x128xf32>,
    } else {
    }
    %c0 = arith.constant 0 : index
    %c0_1 = arith.constant 0 : index
    %3 = vector.load %arg2[%c0, %c0_1] : memref<16x128xf32, #tpu.memory_space<vmem>>, vector<16x128xf32>
    %c0_2 = arith.constant 0 : index
    %c0_3 = arith.constant 0 : index
    %4 = vector.load %arg3[%c0_2, %c0_3] : memref<16x128xf32, #tpu.memory_space<vmem>>, vector<16x128xf32>
    %5 = arith.subf %3, %4 : vector<16x128xf32>
    %6 = arith.mulf %5, %5 : vector<16x128xf32>
    %c0_4 = arith.constant 0 : index
    %c0_5 = arith.constant 0 : index
    %7 = vector.load %arg5[%c0_4, %c0_5] : memref<8x128xf32, #tpu.memory_space<vmem>>, vector<8x128xf32>
    %8 = vector.shape_cast %6 : vector<16x128xf32> to vector<2x8x128xf32>
    %cst = arith.constant dense<0.000000e+00> : vector<8x128xf32>
    %9 = vector.multi_reduction <add>, %8, %cst [0] : vector<2x8x128xf32> to vector<8x128xf32>
    %10 = arith.addf %7, %9 : vector<8x128xf32>
    %c0_6 = arith.constant 0 : index
    %c0_7 = arith.constant 0 : index
    %11 = vector.load %arg5[%c0_6, %c0_7] : memref<8x128xf32, #tpu.memory_space<vmem>>, vector<8x128xf32>
    tpu.vector_store %arg5[%c0_6, %c0_7], %10 {strides = array<i32>} : memref<8x128xf32, #tpu.memory_space<vmem>>, vector<8x128xf32>,
    %c0_i32_8 = arith.constant 0 : i32
    %12 = arith.cmpi eq, %arg1, %c0_i32_8 : i32
    %13 = arith.extui %12 : i1 to i32
    %c0_i32_9 = arith.constant 0 : i32
    %14 = arith.cmpi ne, %13, %c0_i32_9 : i32
    scf.if %14 {
      %c0_10 = arith.constant 0 : index
      %c0_11 = arith.constant 0 : index
      %15 = vector.load %arg5[%c0_10, %c0_11] : memref<8x128xf32, #tpu.memory_space<vmem>>, vector<8x128xf32>
      %cst_12 = arith.constant dense<0.000000e+00> : vector<128xf32>
      %16 = vector.multi_reduction <add>, %15, %cst_12 [0] : vector<8x128xf32> to vector<128xf32>
      %17 = vector.shape_cast %16 : vector<128xf32> to vector<1x128xf32>
      %18 = vector.shape_cast %17 : vector<1x128xf32> to vector<1x1x128xf32>
      %c0_13 = arith.constant 0 : index
      %c0_14 = arith.constant 0 : index
      %c0_15 = arith.constant 0 : index
      %19 = vector.load %arg4[%c0_13, %c0_14, %c0_15] : memref<1x1x128xf32, #tpu.memory_space<vmem>>, vector<1x1x128xf32>
      tpu.vector_store %arg4[%c0_13, %c0_14, %c0_15], %18 {strides = array<i32>} : memref<1x1x128xf32, #tpu.memory_space<vmem>>, vector<1x1x128xf32>,
    } else {
    }
    return
  }
  func.func @transform_0(%arg0: i32, %arg1: i32) -> (i32, i32) {
    %c1_i32 = arith.constant 1 : i32
    %0 = arith.muli %arg0, %c1_i32 : i32
    %1 = arith.addi %0, %arg1 : i32
    %c0_i32 = arith.constant 0 : i32
    %c0_i32_0 = arith.constant 0 : i32
    return %1, %c0_i32 : i32, i32
  }
  func.func @transform_1(%arg0: i32, %arg1: i32) -> (i32, i32) {
    %c1_i32 = arith.constant 1 : i32
    %0 = arith.muli %arg0, %c1_i32 : i32
    %1 = arith.addi %0, %arg1 : i32
    %c0_i32 = arith.constant 0 : i32
    %c0_i32_0 = arith.constant 0 : i32
    return %1, %c0_i32 : i32, i32
  }
  func.func @transform_2(%arg0: i32, %arg1: i32) -> (i32, i32, i32) {
    %c0_i32 = arith.constant 0 : i32
    %c0_i32_0 = arith.constant 0 : i32
    %c0_i32_1 = arith.constant 0 : i32
    return %arg0, %c0_i32, %c0_i32_0 : i32, i32, i32
  }
}

</mosaic_0001>

<llo_original>
// kernel: tpu_custom_call.1
$region0: #{tpu_custom_call.1}
  #allocation0 [shape = 'u32[]', space=smem, size = 0x4, offset = 0x4, fixed_abs, tag = 'smem constant byte address 0x4 - core index']
  #allocation1 [shape = 'u32[144,128]{1,0:T(1,128)}', space=vmem, size = 0x12000, scoped, tag = 'internal scratch']
  #allocation2 [shape = 'f32[8,128]{1,0:T(8,128)}', space=vmem, size = 0x1000, scoped, tag = 'scratch operand']
  %s0 = inlined_call_operand.hbm [shape: f32[16,128], index: 0, kind: input, shape index: {}]
  %s1 = inlined_call_operand.hbm [shape: f32[16,128], index: 1, kind: input, shape index: {}]
  %s2 = inlined_call_operand.hbm [shape: f32[1,1,128], index: 2, kind: output, shape index: {}]
  %s3 = sld [smem:[#allocation0]]
  $region34: #{tpu_custom_call.1} parent=0
    _
  %s5 = ssub.s32 1, %s3
  %s6 = scalar_select 0, %s5, %s3
  $region1: #{tpu_custom_call.1} parent=0
    #allocation3 [shape = 'u8[8192]{0}', space=vmem, size = 0x2000, scoped, tag = 'input window, operand 0, single buffered']
    #allocation4 [shape = 's32[1]{0}', space=sflag, size = 0x4, scoped, tag = 'scoped memory for tpu_custom_call.1']
    #allocation5 [shape = 's32[1]{0}', space=sflag, size = 0x4, scoped, tag = 'scoped memory for tpu_custom_call.1']
    #allocation6 [shape = 'u8[8192]{0}', space=vmem, size = 0x2000, scoped, tag = 'input window, operand 1, single buffered']
    #allocation7 [shape = 's32[1]{0}', space=sflag, size = 0x4, scoped, tag = 'scoped memory for tpu_custom_call.1']
    #allocation8 [shape = 'u8[512]{0}', space=vmem, size = 0x400, scoped, tag = 'output window, operand 0, single buffered']
    %7 = vsyncpa [#allocation4], 0
    %8 = vsyncpa [#allocation7], 0
    %9 = vsyncpa [#allocation5], 0
    // Predicated region
    $region2: #{tpu_custom_call.1} parent=1 // pred_check
      _
    $region3: #{tpu_custom_call.1} parent=1 // pred_check_branch
      %11 = sbr.rel (0) target = $region5
    $region4: #{tpu_custom_call.1} parent=1 // pred_region
      %s12 = sadd.s32 0, 0
      %s13 = smul.u32 2, %s12
      %s15 = ssub.s32 256, 256
      %16 = vsyncadd [#allocation4], %s15
      %s17 = smul.addr %s13, 128
      %s18 = scalar_lea.hbm %s0, %s17
      %s19 = sshll.u32 [#allocation3], 4
      %s20 = int_to_ptr.vmem [resolvable:$true] %s19
      %25 = dma.hbm_to_vmem [thread:$0]  %s18, 256, %s20, [#allocation4], 128, 128, 8
    $region5: #{tpu_custom_call.1} parent=1 // pred_fallthru
      _
    // Predicated region
    $region6: #{tpu_custom_call.1} parent=1 // pred_check
      _
    $region7: #{tpu_custom_call.1} parent=1 // pred_check_branch
      %27 = sbr.rel (0) target = $region9
    $region8: #{tpu_custom_call.1} parent=1 // pred_region
      %s28 = sadd.s32 0, 0
      %s29 = smul.u32 2, %s28
      %s31 = ssub.s32 256, 256
      %32 = vsyncadd [#allocation7], %s31
      %s33 = smul.addr %s29, 128
      %s34 = scalar_lea.hbm %s1, %s33
      %s35 = sshll.u32 [#allocation6], 4
      %s36 = int_to_ptr.vmem [resolvable:$true] %s35
      %41 = dma.hbm_to_vmem [thread:$0]  %s34, 256, %s36, [#allocation7], 128, 128, 8
    $region9: #{tpu_custom_call.1} parent=1 // pred_fallthru
      _
    // Predicated region
    $region10: #{tpu_custom_call.1} parent=1 // pred_check
      _
    $region11: #{tpu_custom_call.1} parent=1 // pred_check_branch
      %43 = sbr.rel (0) target = $region13
    $region12: #{tpu_custom_call.1} parent=1 // pred_region
      %44 = dma.done [#allocation4], 256
    $region13: #{tpu_custom_call.1} parent=1 // pred_fallthru
      _
    // Predicated region
    $region14: #{tpu_custom_call.1} parent=1 // pred_check
      _
    $region15: #{tpu_custom_call.1} parent=1 // pred_check_branch
      %46 = sbr.rel (0) target = $region17
    $region16: #{tpu_custom_call.1} parent=1 // pred_region
      %47 = dma.done [#allocation7], 256
    $region17: #{tpu_custom_call.1} parent=1 // pred_fallthru
      _
    %s48 = sadd.s32 0, 0
    %s49 = smul.u32 2, %s48
    %s50 = sadd.s32 0, 0
    %s51 = smul.u32 2, %s50
    %p52 = scmp.eq.s32.totalorder 0, 0
    // Predicated region
    $region18: #{tpu_custom_call.1} parent=1 // pred_check
      %p53 = pneg %p52
    $region19: #{tpu_custom_call.1} parent=1 // pred_check_branch
      %55 = sbr.rel (%p53) target = $region21
    $region20: #{tpu_custom_call.1} parent=1 // pred_region
      %56 = vst [vmem:[#allocation2] sm:$0xff] 0.0
    $region21: #{tpu_custom_call.1} parent=1 // pred_fallthru
      _
    %v57 = vld [vmem:[#allocation3] sm:$0xff]
    %v58 = vld [vmem:[#allocation3 + $0x8] sm:$0xff]
    %v59 = vld [vmem:[#allocation6] sm:$0xff]
    %v60 = vld [vmem:[#allocation6 + $0x8] sm:$0xff]
    %v61 = vsub.f32 %v57, %v59
    %v62 = vsub.f32 %v58, %v60
    %v63 = vmul.f32 %v61, %v61
    %v64 = vmul.f32 %v62, %v62
    %v65 = vld [vmem:[#allocation2] sm:$0xff]
    %v66 = vadd.f32 %v63, %v64
    %v67 = vadd.f32 %v65, %v66
    %68 = vst [vmem:[#allocation2] sm:$0xff] %v67
    // Predicated region
    $region22: #{tpu_custom_call.1} parent=1 // pred_check
      %p69 = pneg %p52
    $region23: #{tpu_custom_call.1} parent=1 // pred_check_branch
      %71 = sbr.rel (%p69) target = $region25
    $region24: #{tpu_custom_call.1} parent=1 // pred_region
      %v72 = vld [vmem:[#allocation2] sm:$0xff]
      %v73 = vrot.slane %v72, 4
      %v74 = vadd.f32 %v72, %v73
      %v75 = vrot.slane %v74, 2
      %v76 = vadd.f32 %v74, %v75
      %v77 = vrot.slane %v76, 1
      %v78 = vadd.f32 %v76, %v77
      %79 = vst [vmem:[#allocation8] sm:$0x1] %v78
    $region25: #{tpu_custom_call.1} parent=1 // pred_fallthru
      _
    // Predicated region
    $region26: #{tpu_custom_call.1} parent=1 // pred_check
      _
    $region27: #{tpu_custom_call.1} parent=1 // pred_check_branch
      %81 = sbr.rel (0) target = $region29
    $region28: #{tpu_custom_call.1} parent=1 // pred_region
      %s83 = ssub.s32 16, 16
      %84 = vsyncadd [#allocation5], %s83
      %s86 = sshll.u32 [#allocation8], 4
      %s87 = int_to_ptr.vmem [resolvable:$true] %s86
      %89 = dma.vmem_to_hbm [thread:$0]  %s87, 16, %s2, [#allocation5]
    $region29: #{tpu_custom_call.1} parent=1 // pred_fallthru
      _
    // Predicated region
    $region30: #{tpu_custom_call.1} parent=1 // pred_check
      _
    $region31: #{tpu_custom_call.1} parent=1 // pred_check_branch
      %91 = sbr.rel (0) target = $region33
    $region32: #{tpu_custom_call.1} parent=1 // pred_region
      %92 = dma.done [#allocation5], 16
    $region33: #{tpu_custom_call.1} parent=1 // pred_fallthru
      _
    %93 = vsyncpa [#allocation4], 1
    %94 = vsyncpa [#allocation7], 1
    %95 = vsyncpa [#allocation5], 1

</llo_original>
